<compile_context>
chip_gen: v7x
topology: tpu7x:2x2x1
jax: 0.10.0
libtpu: 0.0.40
codegen_flags: <defaults>
</compile_context>

<pallas_src>
import functools

import jax
import jax.numpy as jnp
from jax.experimental import pallas as pl
from jax.experimental.pallas import tpu as pltpu


def _round_up(x, m):
    return (x + m - 1) // m * m


def _reward_kernel(out_emb_ref, ref_emb_ref, lens_ref, rew_ref, *, lam):
    # out_emb_ref / ref_emb_ref: [TB, D] (bf16 or f32); lens_ref: [TB, 2] f32
    # (col 0 = out_len, col 1 = ref_len); rew_ref: [TB, 1] f32.
    a = out_emb_ref[...].astype(jnp.float32)
    b = ref_emb_ref[...].astype(jnp.float32)

    dot = jnp.sum(a * b, axis=-1, keepdims=True)           # [TB, 1]
    na2 = jnp.sum(a * a, axis=-1, keepdims=True)           # [TB, 1]
    nb2 = jnp.sum(b * b, axis=-1, keepdims=True)           # [TB, 1]
    # Fused rsqrt of the norm product; the clamp guards zero-norm (padded) rows
    # and is a no-op for real embeddings.
    cos = dot * jax.lax.rsqrt(jnp.maximum(na2 * nb2, 1e-12))

    out_len = lens_ref[:, 0:1]                              # [TB, 1]
    ref_len = lens_ref[:, 1:2]                              # [TB, 1]
    reduce_rate = (ref_len - out_len) / ref_len             # padded rows use ref_len=1

    rew_ref[...] = (1.0 - lam) * cos + lam * reduce_rate


def reward_model_forward(outputs_emb, references_emb, outputs_length, ref_length,
                         *, lam=0.1, tile_b=512):
    """Pallas-backed RewardModel.forward (post-encoding).

    Args:
      outputs_emb:     [B, D] float (bf16 recommended: halves HBM traffic)
      references_emb:  [B, D] float, same dtype as outputs_emb
      outputs_length:  [B]    numeric
      ref_length:      [B]    numeric
      lam:             blend factor (module default 0.1)
      tile_b:          rows per grid step (rounded up to a multiple of 128)

    Returns:
      [B] float32 rewards (one scalar per example).  The torch module returned
      a Python list of 1-element tensors; unpack on host only if truly needed
      (it costs B separate device dispatches).
    """
    B, D = outputs_emb.shape
    assert references_emb.shape == (B, D)

    tb = _round_up(min(tile_b, B), 128)
    Bp = _round_up(B, tb)

    out_len = jnp.asarray(outputs_length, jnp.float32).reshape(B)
    ref_len = jnp.asarray(ref_length, jnp.float32).reshape(B)
    lens = jnp.stack([out_len, ref_len], axis=-1)           # [B, 2]

    if Bp != B:
        pad = Bp - B
        outputs_emb = jnp.pad(outputs_emb, ((0, pad), (0, 0)))
        references_emb = jnp.pad(references_emb, ((0, pad), (0, 0)))
        # Pad lengths with 1.0 so padded rows never divide by zero.
        lens = jnp.pad(lens, ((0, pad), (0, 0)), constant_values=1.0)

    emb_bytes = jnp.dtype(outputs_emb.dtype).itemsize
    rewards = pl.pallas_call(
        functools.partial(_reward_kernel, lam=lam),
        out_shape=jax.ShapeDtypeStruct((Bp, 1), jnp.float32),
        grid=(Bp // tb,),
        in_specs=[
            pl.BlockSpec((tb, D), lambda i: (i, 0)),
            pl.BlockSpec((tb, D), lambda i: (i, 0)),
            pl.BlockSpec((tb, 2), lambda i: (i, 0)),
        ],
        out_specs=pl.BlockSpec((tb, 1), lambda i: (i, 0)),
        compiler_params=pltpu.CompilerParams(
            dimension_semantics=("parallel",)),
        cost_estimate=pl.CostEstimate(
            flops=6 * Bp * D,
            transcendentals=Bp,
            bytes_accessed=2 * Bp * D * emb_bytes + 3 * Bp * 4,
        ),
    )(outputs_emb, references_emb, lens)

    return rewards[:B, 0]                                   # [B] f32


def _reference_forward(outputs_emb, references_emb, outputs_length, ref_length,
                       lam=0.1):
    """Pure-JAX reference for correctness checking."""
    a = outputs_emb.astype(jnp.float32)
    b = references_emb.astype(jnp.float32)
    dot = jnp.sum(a * b, axis=-1)
    cos = dot / (jnp.linalg.norm(a, axis=-1) * jnp.linalg.norm(b, axis=-1))
    ol = jnp.asarray(outputs_length, jnp.float32)
    rl = jnp.asarray(ref_length, jnp.float32)
    reduce_rate = (rl - ol) / rl
    return (1.0 - lam) * cos + lam * reduce_rate


if __name__ == "__main__":
    # Small synthetic batch of "sentence embeddings" (stand-in for mpnet encode).
    B, D = 200, 256
    key = jax.random.PRNGKey(0)
    k1, k2, k3, k4 = jax.random.split(key, 4)

    outputs_emb = jax.random.normal(k1, (B, D), jnp.float32).astype(jnp.bfloat16)
    references_emb = jax.random.normal(k2, (B, D), jnp.float32).astype(jnp.bfloat16)
    ref_length = jax.random.randint(k3, (B,), 10, 50).astype(jnp.float32)
    outputs_length = jnp.clip(
        ref_length - jax.random.randint(k4, (B,), 0, 10).astype(jnp.float32),
        1.0, None)

    # tile_b=128 so the small demo exercises a multi-step grid (Bp=256 -> 2
    # steps) plus the batch-padding path; production default is 512.
    rewards = reward_model_forward(outputs_emb, references_emb,
                                   outputs_length, ref_length, tile_b=128)
    rewards = jax.block_until_ready(rewards)

    want = _reference_forward(outputs_emb, references_emb,
                              outputs_length, ref_length)
    assert rewards.shape == (B,)
    assert jnp.allclose(rewards, want, atol=1e-5, rtol=1e-5), (rewards, want)

    print("KERNEL_OK")
</pallas_src>

<mosaic_0001>
module attributes {stable_mosaic.version = 11 : i64} {
  func.func @_reward_kernel(%arg0: i32, %arg1: memref<128x256xbf16, #tpu.memory_space<vmem>>, %arg2: memref<128x256xbf16, #tpu.memory_space<vmem>>, %arg3: memref<128x2xf32, #tpu.memory_space<vmem>>, %arg4: memref<128x1xf32, #tpu.memory_space<vmem>>) attributes {dimension_semantics = [#tpu.dimension_semantics<parallel>], iteration_bounds = array<i64: 2>, scalar_prefetch = 0 : i64, scratch_operands = 0 : i64, tpu.core_type = #tpu.core_type<tc>, window_params = [{transform_indices = @transform_0, window_bounds = array<i64: 128, 256>}, {transform_indices = @transform_1, window_bounds = array<i64: 128, 256>}, {transform_indices = @transform_2, window_bounds = array<i64: 128, 2>}, {transform_indices = @transform_3, window_bounds = array<i64: 128, 1>}]} {
    %c0 = arith.constant 0 : index
    %c0_0 = arith.constant 0 : index
    %0 = vector.load %arg1[%c0, %c0_0] : memref<128x256xbf16, #tpu.memory_space<vmem>>, vector<128x256xbf16>
    %1 = arith.extf %0 : vector<128x256xbf16> to vector<128x256xf32>
    %c0_1 = arith.constant 0 : index
    %c0_2 = arith.constant 0 : index
    %2 = vector.load %arg2[%c0_1, %c0_2] : memref<128x256xbf16, #tpu.memory_space<vmem>>, vector<128x256xbf16>
    %3 = arith.extf %2 : vector<128x256xbf16> to vector<128x256xf32>
    %4 = arith.mulf %1, %3 : vector<128x256xf32>
    %cst = arith.constant dense<0.000000e+00> : vector<128xf32>
    %5 = vector.multi_reduction <add>, %4, %cst [1] : vector<128x256xf32> to vector<128xf32>
    %6 = vector.shape_cast %5 : vector<128xf32> to vector<128x1xf32>
    %7 = arith.mulf %1, %1 : vector<128x256xf32>
    %cst_3 = arith.constant dense<0.000000e+00> : vector<128xf32>
    %8 = vector.multi_reduction <add>, %7, %cst_3 [1] : vector<128x256xf32> to vector<128xf32>
    %9 = vector.shape_cast %8 : vector<128xf32> to vector<128x1xf32>
    %10 = arith.mulf %3, %3 : vector<128x256xf32>
    %cst_4 = arith.constant dense<0.000000e+00> : vector<128xf32>
    %11 = vector.multi_reduction <add>, %10, %cst_4 [1] : vector<128x256xf32> to vector<128xf32>
    %12 = vector.shape_cast %11 : vector<128xf32> to vector<128x1xf32>
    %13 = arith.mulf %9, %12 : vector<128x1xf32>
    %cst_5 = arith.constant 9.99999996E-13 : f32
    %14 = vector.broadcast %cst_5 : f32 to vector<128x1xf32>
    %15 = arith.maximumf %13, %14 : vector<128x1xf32>
    %16 = math.rsqrt %15 : vector<128x1xf32>
    %17 = arith.mulf %6, %16 : vector<128x1xf32>
    %c0_6 = arith.constant 0 : index
    %c0_7 = arith.constant 0 : index
    %18 = vector.load %arg3[%c0_6, %c0_7] : memref<128x2xf32, #tpu.memory_space<vmem>>, vector<128x1xf32>
    %c0_8 = arith.constant 0 : index
    %c1 = arith.constant 1 : index
    %19 = vector.load %arg3[%c0_8, %c1] : memref<128x2xf32, #tpu.memory_space<vmem>>, vector<128x1xf32>
    %20 = arith.subf %19, %18 : vector<128x1xf32>
    %21 = arith.divf %20, %19 : vector<128x1xf32>
    %cst_9 = arith.constant 0.899999976 : f32
    %22 = vector.broadcast %cst_9 : f32 to vector<128x1xf32>
    %23 = arith.mulf %22, %17 : vector<128x1xf32>
    %cst_10 = arith.constant 1.000000e-01 : f32
    %24 = vector.broadcast %cst_10 : f32 to vector<128x1xf32>
    %25 = arith.mulf %24, %21 : vector<128x1xf32>
    %26 = arith.addf %23, %25 : vector<128x1xf32>
    %c0_11 = arith.constant 0 : index
    %c0_12 = arith.constant 0 : index
    %27 = vector.load %arg4[%c0_11, %c0_12] : memref<128x1xf32, #tpu.memory_space<vmem>>, vector<128x1xf32>
    tpu.vector_store %arg4[%c0_11, %c0_12], %26 {strides = array<i32>} : memref<128x1xf32, #tpu.memory_space<vmem>>, vector<128x1xf32>,
    return
  }
  func.func @transform_0(%arg0: i32) -> (i32, i32) {
    %c0_i32 = arith.constant 0 : i32
    %c0_i32_0 = arith.constant 0 : i32
    return %arg0, %c0_i32 : i32, i32
  }
  func.func @transform_1(%arg0: i32) -> (i32, i32) {
    %c0_i32 = arith.constant 0 : i32
    %c0_i32_0 = arith.constant 0 : i32
    return %arg0, %c0_i32 : i32, i32
  }
  func.func @transform_2(%arg0: i32) -> (i32, i32) {
    %c0_i32 = arith.constant 0 : i32
    %c0_i32_0 = arith.constant 0 : i32
    return %arg0, %c0_i32 : i32, i32
  }
  func.func @transform_3(%arg0: i32) -> (i32, i32) {
    %c0_i32 = arith.constant 0 : i32
    %c0_i32_0 = arith.constant 0 : i32
    return %arg0, %c0_i32 : i32, i32
  }
}

</mosaic_0001>

<llo_original>
// kernel: tpu_custom_call.1
$region0: #{tpu_custom_call.1}
  #allocation0 [shape = 'u32[]', space=smem, size = 0x4, offset = 0x4, fixed_abs, tag = 'smem constant byte address 0x4 - core index']
  #allocation1 [shape = 'u32[144,128]{1,0:T(1,128)}', space=vmem, size = 0x12000, scoped, tag = 'internal scratch']
  %s0 = inlined_call_operand.vmem [shape: bf16[256,256], index: 0, kind: input, shape index: {}]
  %s1 = inlined_call_operand.hbm [shape: bf16[256,256], index: 1, kind: input, shape index: {}]
  %s2 = inlined_call_operand.vmem [shape: f32[256,2], index: 2, kind: input, shape index: {}]
  %s3 = inlined_call_operand.vmem [shape: f32[256,1], index: 3, kind: output, shape index: {}]
  %s4 = sld [smem:[#allocation0]]
  $region49: #{tpu_custom_call.1} parent=0
    _
  %s6 = ssub.s32 1, %s4
  %s7 = scalar_select 0, %s6, %s4
  $region1: #{tpu_custom_call.1} parent=0
    #allocation2 [shape = 'u8[131072]{0}', space=vmem, size = 0x20000, scoped, tag = 'input window, operand 1']
    #allocation3 [shape = 's32[2]{0}', space=sflag, size = 0x8, scoped, tag = 'scoped memory for tpu_custom_call.1']
    %8 = vsyncpa [#allocation3], 0
    %s9 = scalar_lea.sflag [#allocation3], 1
    %10 = vsyncpa %s9, 0
    loop: start=0, step=1, limit=4
    $region2: #{tpu_custom_call.1} parent=1 // loop_pre_header
      _
    $region3: #{tpu_custom_call.1} parent=1 // loop_header
      %s12 = sphi 0, %s16
      %p13 = scmp.ge.s32.totalorder %s12, 4
      %s22 = sphi 0, %s24
      %s25 = sphi 0, %s22
      %s26 = sphi 0, %s25
      %s42 = sphi 0, %s26
      %s48 = sphi 0, %s50
      %s51 = sphi 0, %s48
      %s52 = sphi 0, %s51
      %s68 = sphi 0, %s52
      %s74 = sphi 0, %s76
      %s77 = sphi 0, %s74
      %s78 = sphi 0, %s77
      %s94 = sphi 0, %s78
      %s100 = sphi 0, %s102
      %s103 = sphi 0, %s100
      %s104 = sphi 0, %s103
      %s120 = sphi 0, %s104
    $region4: #{tpu_custom_call.1} parent=1 // loop_header_branch
      %15 = sbr.rel (%p13) target = $region8
    $region5: #{tpu_custom_call.1} parent=1 // loop_body
      %s17 = ssub.s32 %s12, 1
      %s18 = ssub.s32 %s12, 2
      %s19 = sadd.s32 %s12, 1
      %s20 = ssub.s32 %s12, %s19
      %p21 = scmp.eq.s32.totalorder %s20, 0
      %s23 = sadd.s32 %s22, 1
      %s24 = scalar_select %p21, %s22, %s23
      %p27 = pneg %p21
      %p28 = scmp.eq.s32.totalorder %s12, 1
      %p29 = por %p27, %p28
      %p30 = scmp.ne.s32.totalorder %s22, %s25
      %p31 = scmp.eq.s32.totalorder %s12, 0
      %p32 = por %p30, %p31
      %p33 = scmp.ne.s32.totalorder %s22, %s25
      %p34 = scmp.eq.s32.totalorder %s17, 1
      %p35 = por %p33, %p34
      %p36 = scmp.ne.s32.totalorder %s25, %s26
      %p37 = scmp.eq.s32.totalorder %s17, 0
      %p38 = por %p36, %p37
      %p39 = scmp.ne.s32.totalorder %s25, %s26
      %p40 = scmp.eq.s32.totalorder %s18, 1
      %p41 = por %p39, %p40
      %p43 = scmp.ne.s32.totalorder %s26, %s42
      %p44 = scmp.eq.s32.totalorder %s18, 0
      %p45 = por %p43, %p44
      %s46 = ssub.s32 %s12, %s19
      %p47 = scmp.eq.s32.totalorder %s46, 0
      %s49 = sadd.s32 %s48, 1
      %s50 = scalar_select %p47, %s48, %s49
      %p53 = pneg %p47
      %p54 = scmp.eq.s32.totalorder %s12, 1
      %p55 = por %p53, %p54
      %p56 = scmp.ne.s32.totalorder %s48, %s51
      %p57 = scmp.eq.s32.totalorder %s12, 0
      %p58 = por %p56, %p57
      %p59 = scmp.ne.s32.totalorder %s48, %s51
      %p60 = scmp.eq.s32.totalorder %s17, 1
      %p61 = por %p59, %p60
      %p62 = scmp.ne.s32.totalorder %s51, %s52
      %p63 = scmp.eq.s32.totalorder %s17, 0
      %p64 = por %p62, %p63
      %p65 = scmp.ne.s32.totalorder %s51, %s52
      %p66 = scmp.eq.s32.totalorder %s18, 1
      %p67 = por %p65, %p66
      %p69 = scmp.ne.s32.totalorder %s52, %s68
      %p70 = scmp.eq.s32.totalorder %s18, 0
      %p71 = por %p69, %p70
      %s72 = ssub.s32 %s12, %s19
      %p73 = scmp.eq.s32.totalorder %s72, 0
      %s75 = sadd.s32 %s74, 1
      %s76 = scalar_select %p73, %s74, %s75
      %p79 = pneg %p73
      %p80 = scmp.eq.s32.totalorder %s12, 1
      %p81 = por %p79, %p80
      %p82 = scmp.ne.s32.totalorder %s74, %s77
      %p83 = scmp.eq.s32.totalorder %s12, 0
      %p84 = por %p82, %p83
      %p85 = scmp.ne.s32.totalorder %s74, %s77
      %p86 = scmp.eq.s32.totalorder %s17, 1
      %p87 = por %p85, %p86
      %p88 = scmp.ne.s32.totalorder %s77, %s78
      %p89 = scmp.eq.s32.totalorder %s17, 0
      %p90 = por %p88, %p89
      %p91 = scmp.ne.s32.totalorder %s77, %s78
      %p92 = scmp.eq.s32.totalorder %s18, 1
      %p93 = por %p91, %p92
      %p95 = scmp.ne.s32.totalorder %s78, %s94
      %p96 = scmp.eq.s32.totalorder %s18, 0
      %p97 = por %p95, %p96
      %s98 = ssub.s32 %s12, %s19
      %p99 = scmp.eq.s32.totalorder %s98, 0
      %s101 = sadd.s32 %s100, 1
      %s102 = scalar_select %p99, %s100, %s101
      %p105 = pneg %p99
      %p106 = scmp.eq.s32.totalorder %s12, 1
      %p107 = por %p105, %p106
      %p108 = scmp.ne.s32.totalorder %s100, %s103
      %p109 = scmp.eq.s32.totalorder %s12, 0
      %p110 = por %p108, %p109
      %p111 = scmp.ne.s32.totalorder %s100, %s103
      %p112 = scmp.eq.s32.totalorder %s17, 1
      %p113 = por %p111, %p112
      %p114 = scmp.ne.s32.totalorder %s103, %s104
      %p115 = scmp.eq.s32.totalorder %s17, 0
      %p116 = por %p114, %p115
      %p117 = scmp.ne.s32.totalorder %s103, %s104
      %p118 = scmp.eq.s32.totalorder %s18, 1
      %p119 = por %p117, %p118
      %p121 = scmp.ne.s32.totalorder %s104, %s120
      %p122 = scmp.eq.s32.totalorder %s18, 0
      %p123 = por %p121, %p122
      %p124 = scmp.le.s32.totalorder 1, %s12
      %p125 = scmp.lt.s32.totalorder %s12, 3
      %p126 = pnand %p124, %p125
      %p127 = pneg %p126
      // Predicated region
      $region9: #{tpu_custom_call.1} parent=5 // pred_check
        _
      $region10: #{tpu_custom_call.1} parent=5 // pred_check_branch
        %129 = sbr.rel (%p126) target = $region12
      $region11: #{tpu_custom_call.1} parent=5 // pred_region
        %s130 = ssub.s32 %s12, 1
      $region12: #{tpu_custom_call.1} parent=5 // pred_fallthru
        _
      %p131 = scmp.lt.s32.totalorder %s12, 2
      // Predicated region
      $region13: #{tpu_custom_call.1} parent=5 // pred_check
        %p132 = pneg %p131
      $region14: #{tpu_custom_call.1} parent=5 // pred_check_branch
        %134 = sbr.rel (%p132) target = $region16
      $region15: #{tpu_custom_call.1} parent=5 // pred_region
        // Predicated region
        $region17: #{tpu_custom_call.1} parent=15 // pred_check
          %p135 = pneg %p32
        $region18: #{tpu_custom_call.1} parent=15 // pred_check_branch
          %137 = sbr.rel (%p135) target = $region20
        $region19: #{tpu_custom_call.1} parent=15 // pred_region
          %s138 = smul.u32 16, %s12
          %p139 = scmp.lt.s32.totalorder %s138, 31
          %s140 = scalar_select %p139, %s138, 31
          %s141 = smul.addr %s140, 2
          %s142 = smul.addr %s141, 4
          %s143 = scalar_lea.vmem %s0, %s142
          %s144 = smul.u32 16, %s12
        $region20: #{tpu_custom_call.1} parent=15 // pred_fallthru
          _
        // Predicated region
        $region21: #{tpu_custom_call.1} parent=15 // pred_check
          %p145 = pneg %p58
        $region22: #{tpu_custom_call.1} parent=15 // pred_check_branch
          %147 = sbr.rel (%p145) target = $region24
        $region23: #{tpu_custom_call.1} parent=15 // pred_region
          %s148 = sand.u32 %s48, 1
          %s149 = scalar_lea.sflag [#allocation3], %s148
          %s150 = sand.u32 %s48, 1
          %s151 = smul.addr %s150, 128
          %s152 = scalar_lea.vmem [#allocation2], %s151
          %s153 = smul.u32 16, %s12
          %s155 = ssub.s32 2048, 2048
          %156 = vsyncadd %s149, %s155
          %s157 = smul.addr %s153, 2
          %s158 = smul.addr %s157, 64
          %s159 = scalar_lea.hbm %s1, %s158
          %s160 = sshll.u32 %s152, 4
          %s161 = int_to_ptr.vmem [resolvable:$true] %s160
          %166 = dma.hbm_to_vmem [thread:$0]  %s159, 2048, %s161, %s149, 128, 128, 8
        $region24: #{tpu_custom_call.1} parent=15 // pred_fallthru
          _
        // Predicated region
        $region25: #{tpu_custom_call.1} parent=15 // pred_check
          %p167 = pneg %p84
        $region26: #{tpu_custom_call.1} parent=15 // pred_check_branch
          %169 = sbr.rel (%p167) target = $region28
        $region27: #{tpu_custom_call.1} parent=15 // pred_region
          %s170 = smul.u32 16, %s12
          %p171 = scmp.lt.s32.totalorder %s170, 31
          %s172 = scalar_select %p171, %s170, 31
          %s173 = smul.addr %s172, 8
          %s174 = scalar_lea.vmem %s2, %s173
          %s175 = smul.u32 16, %s12
        $region28: #{tpu_custom_call.1} parent=15 // pred_fallthru
          _
      $region16: #{tpu_custom_call.1} parent=5 // pred_fallthru
        _
      %p176 = scmp.le.s32.totalorder 1, %s12
      %p177 = scmp.lt.s32.totalorder %s12, 3
      %p178 = pnand %p176, %p177
      %p179 = pneg %p178
      // Predicated region
      $region29: #{tpu_custom_call.1} parent=5 // pred_check
        _
      $region30: #{tpu_custom_call.1} parent=5 // pred_check_branch
        %181 = sbr.rel (%p178) target = $region32
      $region31: #{tpu_custom_call.1} parent=5 // pred_region
        %s182 = ssub.s32 %s12, 1
        %s183 = sand.u32 %s51, 1
        %s184 = scalar_lea.sflag [#allocation3], %s183
        %s185 = sand.u32 %s51, 1
        %s186 = smul.addr %s185, 128
        %s187 = scalar_lea.vmem [#allocation2], %s186
        // Predicated region
        $region33: #{tpu_custom_call.1} parent=31 // pred_check
          %p188 = pneg %p64
        $region34: #{tpu_custom_call.1} parent=31 // pred_check_branch
          %190 = sbr.rel (%p188) target = $region36
        $region35: #{tpu_custom_call.1} parent=31 // pred_region
          %191 = dma.done %s184, 2048
        $region36: #{tpu_custom_call.1} parent=31 // pred_fallthru
          _
        %s192 = smul.u32 16, %s17
        %p193 = scmp.lt.s32.totalorder %s192, 31
        %s194 = scalar_select %p193, %s192, 31
        %s195 = smul.addr %s194, 2
        %s196 = smul.addr %s195, 4
        %s197 = scalar_lea.vmem %s0, %s196
        %p198 = pneg %p38
        %p199 = pneg %p35
        %s200 = sand.u32 %s51, 1
        %s201 = scalar_lea.sflag [#allocation3], %s200
        %s202 = sand.u32 %s51, 1
        %s203 = smul.addr %s202, 128
        %s204 = scalar_lea.vmem [#allocation2], %s203
        %p205 = pneg %p64
        %p206 = pneg %p61
        %s207 = smul.u32 16, %s17
        %p208 = scmp.lt.s32.totalorder %s207, 31
        %s209 = scalar_select %p208, %s207, 31
        %s210 = smul.addr %s209, 8
        %s211 = scalar_lea.vmem %s2, %s210
        %p212 = pneg %p90
        %p213 = pneg %p87
        %p214 = pneg %p116
        %p215 = pneg %p113
        %s216 = smul.u32 16, %s17
        %p217 = scmp.lt.s32.totalorder %s216, 31
        %s218 = scalar_select %p217, %s216, 31
        %s219 = smul.addr %s218, 8
        %s220 = scalar_lea.vmem %s3, %s219
        %s221 = smul.u32 16, %s17
        %p222 = scmp.lt.s32.totalorder %s221, 31
        %s223 = scalar_select %p222, %s221, 31
        %s224 = smul.addr %s223, 2
        %s225 = smul.addr %s224, 4
        %s226 = scalar_lea.vmem %s0, %s225
        %s227 = smul.u32 16, %s17
        %s228 = smul.u32 16, %s17
        %s229 = smul.u32 16, %s17
        %p230 = scmp.lt.s32.totalorder %s229, 31
        %s231 = scalar_select %p230, %s229, 31
        %s232 = smul.addr %s231, 8
        %s233 = scalar_lea.vmem %s2, %s232
        %s234 = smul.u32 16, %s17
        %s235 = smul.u32 16, %s17
        %p236 = scmp.lt.s32.totalorder %s235, 31
        %s237 = scalar_select %p236, %s235, 31
        %s238 = smul.addr %s237, 8
        %s239 = scalar_lea.vmem %s3, %s238
        %s240 = smul.u32 16, %s17
        %v241 = vld [vmem:[%s226] sm:$0xff]
        %v242 = vld [vmem:[%s226 + $0x8] sm:$0xff]
        %v243 = vld [vmem:[%s226 + $0x10] sm:$0xff]
        %v244 = vld [vmem:[%s226 + $0x18] sm:$0xff]
        %v245 = vld [vmem:[%s226 + $0x20] sm:$0xff]
        %v246 = vld [vmem:[%s226 + $0x28] sm:$0xff]
        %v247 = vld [vmem:[%s226 + $0x30] sm:$0xff]
        %v248 = vld [vmem:[%s226 + $0x38] sm:$0xff]
        %v249 = vld [vmem:[%s226 + $0x40] sm:$0xff]
        %v250 = vld [vmem:[%s226 + $0x48] sm:$0xff]
        %v251 = vld [vmem:[%s226 + $0x50] sm:$0xff]
        %v252 = vld [vmem:[%s226 + $0x58] sm:$0xff]
        %v253 = vld [vmem:[%s226 + $0x60] sm:$0xff]
        %v254 = vld [vmem:[%s226 + $0x68] sm:$0xff]
        %v255 = vld [vmem:[%s226 + $0x70] sm:$0xff]
        %v256 = vld [vmem:[%s226 + $0x78] sm:$0xff]
        %v257 = vunpack.c.l.bf16 %v241
        %v258 = vunpack.c.h.bf16 %v241
        %v259 = vunpack.c.l.bf16 %v242
        %v260 = vunpack.c.h.bf16 %v242
        %v261 = vunpack.c.l.bf16 %v243
        %v262 = vunpack.c.h.bf16 %v243
        %v263 = vunpack.c.l.bf16 %v244
        %v264 = vunpack.c.h.bf16 %v244
        %v265 = vunpack.c.l.bf16 %v245
        %v266 = vunpack.c.h.bf16 %v245
        %v267 = vunpack.c.l.bf16 %v246
        %v268 = vunpack.c.h.bf16 %v246
        %v269 = vunpack.c.l.bf16 %v247
        %v270 = vunpack.c.h.bf16 %v247
        %v271 = vunpack.c.l.bf16 %v248
        %v272 = vunpack.c.h.bf16 %v248
        %v273 = vunpack.c.l.bf16 %v249
        %v274 = vunpack.c.h.bf16 %v249
        %v275 = vunpack.c.l.bf16 %v250
        %v276 = vunpack.c.h.bf16 %v250
        %v277 = vunpack.c.l.bf16 %v251
        %v278 = vunpack.c.h.bf16 %v251
        %v279 = vunpack.c.l.bf16 %v252
        %v280 = vunpack.c.h.bf16 %v252
        %v281 = vunpack.c.l.bf16 %v253
        %v282 = vunpack.c.h.bf16 %v253
        %v283 = vunpack.c.l.bf16 %v254
        %v284 = vunpack.c.h.bf16 %v254
        %v285 = vunpack.c.l.bf16 %v255
        %v286 = vunpack.c.h.bf16 %v255
        %v287 = vunpack.c.l.bf16 %v256
        %v288 = vunpack.c.h.bf16 %v256
        %v289 = vld [vmem:[%s187] sm:$0xff]
        %v290 = vld [vmem:[%s187 + $0x8] sm:$0xff]
        %v291 = vld [vmem:[%s187 + $0x10] sm:$0xff]
        %v292 = vld [vmem:[%s187 + $0x18] sm:$0xff]
        %v293 = vld [vmem:[%s187 + $0x20] sm:$0xff]
        %v294 = vld [vmem:[%s187 + $0x28] sm:$0xff]
        %v295 = vld [vmem:[%s187 + $0x30] sm:$0xff]
        %v296 = vld [vmem:[%s187 + $0x38] sm:$0xff]
        %v297 = vld [vmem:[%s187 + $0x40] sm:$0xff]
        %v298 = vld [vmem:[%s187 + $0x48] sm:$0xff]
        %v299 = vld [vmem:[%s187 + $0x50] sm:$0xff]
        %v300 = vld [vmem:[%s187 + $0x58] sm:$0xff]
        %v301 = vld [vmem:[%s187 + $0x60] sm:$0xff]
        %v302 = vld [vmem:[%s187 + $0x68] sm:$0xff]
        %v303 = vld [vmem:[%s187 + $0x70] sm:$0xff]
        %v304 = vld [vmem:[%s187 + $0x78] sm:$0xff]
        %v305 = vunpack.c.l.bf16 %v289
        %v306 = vunpack.c.h.bf16 %v289
        %v307 = vunpack.c.l.bf16 %v290
        %v308 = vunpack.c.h.bf16 %v290
        %v309 = vunpack.c.l.bf16 %v291
        %v310 = vunpack.c.h.bf16 %v291
        %v311 = vunpack.c.l.bf16 %v292
        %v312 = vunpack.c.h.bf16 %v292
        %v313 = vunpack.c.l.bf16 %v293
        %v314 = vunpack.c.h.bf16 %v293
        %v315 = vunpack.c.l.bf16 %v294
        %v316 = vunpack.c.h.bf16 %v294
        %v317 = vunpack.c.l.bf16 %v295
        %v318 = vunpack.c.h.bf16 %v295
        %v319 = vunpack.c.l.bf16 %v296
        %v320 = vunpack.c.h.bf16 %v296
        %v321 = vunpack.c.l.bf16 %v297
        %v322 = vunpack.c.h.bf16 %v297
        %v323 = vunpack.c.l.bf16 %v298
        %v324 = vunpack.c.h.bf16 %v298
        %v325 = vunpack.c.l.bf16 %v299
        %v326 = vunpack.c.h.bf16 %v299
        %v327 = vunpack.c.l.bf16 %v300
        %v328 = vunpack.c.h.bf16 %v300
        %v329 = vunpack.c.l.bf16 %v301
        %v330 = vunpack.c.h.bf16 %v301
        %v331 = vunpack.c.l.bf16 %v302
        %v332 = vunpack.c.h.bf16 %v302
        %v333 = vunpack.c.l.bf16 %v303
        %v334 = vunpack.c.h.bf16 %v303
        %v335 = vunpack.c.l.bf16 %v304
        %v336 = vunpack.c.h.bf16 %v304
        %v337 = vmul.f32 %v257, %v305
        %v338 = vmul.f32 %v258, %v306
        %v339 = vmul.f32 %v259, %v307
        %v340 = vmul.f32 %v260, %v308
        %v341 = vmul.f32 %v261, %v309
        %v342 = vmul.f32 %v262, %v310
        %v343 = vmul.f32 %v263, %v311
        %v344 = vmul.f32 %v264, %v312
        %v345 = vmul.f32 %v265, %v313
        %v346 = vmul.f32 %v266, %v314
        %v347 = vmul.f32 %v267, %v315
        %v348 = vmul.f32 %v268, %v316
        %v349 = vmul.f32 %v269, %v317
        %v350 = vmul.f32 %v270, %v318
        %v351 = vmul.f32 %v271, %v319
        %v352 = vmul.f32 %v272, %v320
        %v353 = vmul.f32 %v273, %v321
        %v354 = vmul.f32 %v274, %v322
        %v355 = vmul.f32 %v275, %v323
        %v356 = vmul.f32 %v276, %v324
        %v357 = vmul.f32 %v277, %v325
        %v358 = vmul.f32 %v278, %v326
        %v359 = vmul.f32 %v279, %v327
        %v360 = vmul.f32 %v280, %v328
        %v361 = vmul.f32 %v281, %v329
        %v362 = vmul.f32 %v282, %v330
        %v363 = vmul.f32 %v283, %v331
        %v364 = vmul.f32 %v284, %v332
        %v365 = vmul.f32 %v285, %v333
        %v366 = vmul.f32 %v286, %v334
        %v367 = vmul.f32 %v287, %v335
        %v368 = vmul.f32 %v288, %v336
        %v369 = vadd.f32 %v337, %v338
        %370 = vadd.xlane.f32.xlu0 %v369
        %v371 = vpop.xlane.xlu0 %370
        %v372 = vadd.f32 %v339, %v340
        %373 = vadd.xlane.f32.xlu0 %v372
        %v374 = vpop.xlane.xlu0 %373
        %v375 = vadd.f32 %v341, %v342
        %376 = vadd.xlane.f32.xlu0 %v375
        %v377 = vpop.xlane.xlu0 %376
        %v378 = vadd.f32 %v343, %v344
        %379 = vadd.xlane.f32.xlu0 %v378
        %v380 = vpop.xlane.xlu0 %379
        %v381 = vadd.f32 %v345, %v346
        %382 = vadd.xlane.f32.xlu0 %v381
        %v383 = vpop.xlane.xlu0 %382
        %v384 = vadd.f32 %v347, %v348
        %385 = vadd.xlane.f32.xlu0 %v384
        %v386 = vpop.xlane.xlu0 %385
        %v387 = vadd.f32 %v349, %v350
        %388 = vadd.xlane.f32.xlu0 %v387
        %v389 = vpop.xlane.xlu0 %388
        %v390 = vadd.f32 %v351, %v352
        %391 = vadd.xlane.f32.xlu0 %v390
        %v392 = vpop.xlane.xlu0 %391
        %v393 = vadd.f32 %v353, %v354
        %394 = vadd.xlane.f32.xlu0 %v393
        %v395 = vpop.xlane.xlu0 %394
        %v396 = vadd.f32 %v355, %v356
        %397 = vadd.xlane.f32.xlu0 %v396
        %v398 = vpop.xlane.xlu0 %397
        %v399 = vadd.f32 %v357, %v358
        %400 = vadd.xlane.f32.xlu0 %v399
        %v401 = vpop.xlane.xlu0 %400
        %v402 = vadd.f32 %v359, %v360
        %403 = vadd.xlane.f32.xlu0 %v402
        %v404 = vpop.xlane.xlu0 %403
        %v405 = vadd.f32 %v361, %v362
        %406 = vadd.xlane.f32.xlu0 %v405
        %v407 = vpop.xlane.xlu0 %406
        %v408 = vadd.f32 %v363, %v364
        %409 = vadd.xlane.f32.xlu0 %v408
        %v410 = vpop.xlane.xlu0 %409
        %v411 = vadd.f32 %v365, %v366
        %412 = vadd.xlane.f32.xlu0 %v411
        %v413 = vpop.xlane.xlu0 %412
        %v414 = vadd.f32 %v367, %v368
        %415 = vadd.xlane.f32.xlu0 %v414
        %v416 = vpop.xlane.xlu0 %415
        %v417 = vmul.f32 %v257, %v257
        %v418 = vmul.f32 %v258, %v258
        %v419 = vmul.f32 %v259, %v259
        %v420 = vmul.f32 %v260, %v260
        %v421 = vmul.f32 %v261, %v261
        %v422 = vmul.f32 %v262, %v262
        %v423 = vmul.f32 %v263, %v263
        %v424 = vmul.f32 %v264, %v264
        %v425 = vmul.f32 %v265, %v265
        %v426 = vmul.f32 %v266, %v266
        %v427 = vmul.f32 %v267, %v267
        %v428 = vmul.f32 %v268, %v268
        %v429 = vmul.f32 %v269, %v269
        %v430 = vmul.f32 %v270, %v270
        %v431 = vmul.f32 %v271, %v271
        %v432 = vmul.f32 %v272, %v272
        %v433 = vmul.f32 %v273, %v273
        %v434 = vmul.f32 %v274, %v274
        %v435 = vmul.f32 %v275, %v275
        %v436 = vmul.f32 %v276, %v276
        %v437 = vmul.f32 %v277, %v277
        %v438 = vmul.f32 %v278, %v278
        %v439 = vmul.f32 %v279, %v279
        %v440 = vmul.f32 %v280, %v280
        %v441 = vmul.f32 %v281, %v281
        %v442 = vmul.f32 %v282, %v282
        %v443 = vmul.f32 %v283, %v283
        %v444 = vmul.f32 %v284, %v284
        %v445 = vmul.f32 %v285, %v285
        %v446 = vmul.f32 %v286, %v286
        %v447 = vmul.f32 %v287, %v287
        %v448 = vmul.f32 %v288, %v288
        %v449 = vadd.f32 %v417, %v418
        %450 = vadd.xlane.f32.xlu0 %v449
        %v451 = vpop.xlane.xlu0 %450
        %v452 = vadd.f32 %v419, %v420
        %453 = vadd.xlane.f32.xlu0 %v452
        %v454 = vpop.xlane.xlu0 %453
        %v455 = vadd.f32 %v421, %v422
        %456 = vadd.xlane.f32.xlu0 %v455
        %v457 = vpop.xlane.xlu0 %456
        %v458 = vadd.f32 %v423, %v424
        %459 = vadd.xlane.f32.xlu0 %v458
        %v460 = vpop.xlane.xlu0 %459
        %v461 = vadd.f32 %v425, %v426
        %462 = vadd.xlane.f32.xlu0 %v461
        %v463 = vpop.xlane.xlu0 %462
        %v464 = vadd.f32 %v427, %v428
        %465 = vadd.xlane.f32.xlu0 %v464
        %v466 = vpop.xlane.xlu0 %465
        %v467 = vadd.f32 %v429, %v430
        %468 = vadd.xlane.f32.xlu0 %v467
        %v469 = vpop.xlane.xlu0 %468
        %v470 = vadd.f32 %v431, %v432
        %471 = vadd.xlane.f32.xlu0 %v470
        %v472 = vpop.xlane.xlu0 %471
        %v473 = vadd.f32 %v433, %v434
        %474 = vadd.xlane.f32.xlu0 %v473
        %v475 = vpop.xlane.xlu0 %474
        %v476 = vadd.f32 %v435, %v436
        %477 = vadd.xlane.f32.xlu0 %v476
        %v478 = vpop.xlane.xlu0 %477
        %v479 = vadd.f32 %v437, %v438
        %480 = vadd.xlane.f32.xlu0 %v479
        %v481 = vpop.xlane.xlu0 %480
        %v482 = vadd.f32 %v439, %v440
        %483 = vadd.xlane.f32.xlu0 %v482
        %v484 = vpop.xlane.xlu0 %483
        %v485 = vadd.f32 %v441, %v442
        %486 = vadd.xlane.f32.xlu0 %v485
        %v487 = vpop.xlane.xlu0 %486
        %v488 = vadd.f32 %v443, %v444
        %489 = vadd.xlane.f32.xlu0 %v488
        %v490 = vpop.xlane.xlu0 %489
        %v491 = vadd.f32 %v445, %v446
        %492 = vadd.xlane.f32.xlu0 %v491
        %v493 = vpop.xlane.xlu0 %492
        %v494 = vadd.f32 %v447, %v448
        %495 = vadd.xlane.f32.xlu0 %v494
        %v496 = vpop.xlane.xlu0 %495
        %v497 = vmul.f32 %v305, %v305
        %v498 = vmul.f32 %v306, %v306
        %v499 = vmul.f32 %v307, %v307
        %v500 = vmul.f32 %v308, %v308
        %v501 = vmul.f32 %v309, %v309
        %v502 = vmul.f32 %v310, %v310
        %v503 = vmul.f32 %v311, %v311
        %v504 = vmul.f32 %v312, %v312
        %v505 = vmul.f32 %v313, %v313
        %v506 = vmul.f32 %v314, %v314
        %v507 = vmul.f32 %v315, %v315
        %v508 = vmul.f32 %v316, %v316
        %v509 = vmul.f32 %v317, %v317
        %v510 = vmul.f32 %v318, %v318
        %v511 = vmul.f32 %v319, %v319
        %v512 = vmul.f32 %v320, %v320
        %v513 = vmul.f32 %v321, %v321
        %v514 = vmul.f32 %v322, %v322
        %v515 = vmul.f32 %v323, %v323
        %v516 = vmul.f32 %v324, %v324
        %v517 = vmul.f32 %v325, %v325
        %v518 = vmul.f32 %v326, %v326
        %v519 = vmul.f32 %v327, %v327
        %v520 = vmul.f32 %v328, %v328
        %v521 = vmul.f32 %v329, %v329
        %v522 = vmul.f32 %v330, %v330
        %v523 = vmul.f32 %v331, %v331
        %v524 = vmul.f32 %v332, %v332
        %v525 = vmul.f32 %v333, %v333
        %v526 = vmul.f32 %v334, %v334
        %v527 = vmul.f32 %v335, %v335
        %v528 = vmul.f32 %v336, %v336
        %v529 = vadd.f32 %v497, %v498
        %530 = vadd.xlane.f32.xlu0 %v529
        %v531 = vpop.xlane.xlu0 %530
        %v532 = vadd.f32 %v499, %v500
        %533 = vadd.xlane.f32.xlu0 %v532
        %v534 = vpop.xlane.xlu0 %533
        %v535 = vadd.f32 %v501, %v502
        %536 = vadd.xlane.f32.xlu0 %v535
        %v537 = vpop.xlane.xlu0 %536
        %v538 = vadd.f32 %v503, %v504
        %539 = vadd.xlane.f32.xlu0 %v538
        %v540 = vpop.xlane.xlu0 %539
        %v541 = vadd.f32 %v505, %v506
        %542 = vadd.xlane.f32.xlu0 %v541
        %v543 = vpop.xlane.xlu0 %542
        %v544 = vadd.f32 %v507, %v508
        %545 = vadd.xlane.f32.xlu0 %v544
        %v546 = vpop.xlane.xlu0 %545
        %v547 = vadd.f32 %v509, %v510
        %548 = vadd.xlane.f32.xlu0 %v547
        %v549 = vpop.xlane.xlu0 %548
        %v550 = vadd.f32 %v511, %v512
        %551 = vadd.xlane.f32.xlu0 %v550
        %v552 = vpop.xlane.xlu0 %551
        %v553 = vadd.f32 %v513, %v514
        %554 = vadd.xlane.f32.xlu0 %v553
        %v555 = vpop.xlane.xlu0 %554
        %v556 = vadd.f32 %v515, %v516
        %557 = vadd.xlane.f32.xlu0 %v556
        %v558 = vpop.xlane.xlu0 %557
        %v559 = vadd.f32 %v517, %v518
        %560 = vadd.xlane.f32.xlu0 %v559
        %v561 = vpop.xlane.xlu0 %560
        %v562 = vadd.f32 %v519, %v520
        %563 = vadd.xlane.f32.xlu0 %v562
        %v564 = vpop.xlane.xlu0 %563
        %v565 = vadd.f32 %v521, %v522
        %566 = vadd.xlane.f32.xlu0 %v565
        %v567 = vpop.xlane.xlu0 %566
        %v568 = vadd.f32 %v523, %v524
        %569 = vadd.xlane.f32.xlu0 %v568
        %v570 = vpop.xlane.xlu0 %569
        %v571 = vadd.f32 %v525, %v526
        %572 = vadd.xlane.f32.xlu0 %v571
        %v573 = vpop.xlane.xlu0 %572
        %v574 = vadd.f32 %v527, %v528
        %575 = vadd.xlane.f32.xlu0 %v574
        %v576 = vpop.xlane.xlu0 %575
        %v577 = vmul.f32 %v451, %v531
        %v578 = vmul.f32 %v454, %v534
        %v579 = vmul.f32 %v457, %v537
        %v580 = vmul.f32 %v460, %v540
        %v581 = vmul.f32 %v463, %v543
        %v582 = vmul.f32 %v466, %v546
        %v583 = vmul.f32 %v469, %v549
        %v584 = vmul.f32 %v472, %v552
        %v585 = vmul.f32 %v475, %v555
        %v586 = vmul.f32 %v478, %v558
        %v587 = vmul.f32 %v481, %v561
        %v588 = vmul.f32 %v484, %v564
        %v589 = vmul.f32 %v487, %v567
        %v590 = vmul.f32 %v490, %v570
        %v591 = vmul.f32 %v493, %v573
        %v592 = vmul.f32 %v496, %v576
        %v593 = vmax.f32 %v577, 1e-12
        %v594 = vmax.f32 %v578, 1e-12
        %v595 = vmax.f32 %v579, 1e-12
        %v596 = vmax.f32 %v580, 1e-12
        %v597 = vmax.f32 %v581, 1e-12
        %v598 = vmax.f32 %v582, 1e-12
        %v599 = vmax.f32 %v583, 1e-12
        %v600 = vmax.f32 %v584, 1e-12
        %v601 = vmax.f32 %v585, 1e-12
        %v602 = vmax.f32 %v586, 1e-12
        %v603 = vmax.f32 %v587, 1e-12
        %v604 = vmax.f32 %v588, 1e-12
        %v605 = vmax.f32 %v589, 1e-12
        %v606 = vmax.f32 %v590, 1e-12
        %v607 = vmax.f32 %v591, 1e-12
        %v608 = vmax.f32 %v592, 1e-12
        %v609 = vrsqrt.pop %v593
        %v610 = vrsqrt.pop %v594
        %v611 = vrsqrt.pop %v595
        %v612 = vrsqrt.pop %v596
        %v613 = vrsqrt.pop %v597
        %v614 = vrsqrt.pop %v598
        %v615 = vrsqrt.pop %v599
        %v616 = vrsqrt.pop %v600
        %v617 = vrsqrt.pop %v601
        %v618 = vrsqrt.pop %v602
        %v619 = vrsqrt.pop %v603
        %v620 = vrsqrt.pop %v604
        %v621 = vrsqrt.pop %v605
        %v622 = vrsqrt.pop %v606
        %v623 = vrsqrt.pop %v607
        %v624 = vrsqrt.pop %v608
        %v625 = vmul.f32 %v371, %v609
        %v626 = vmul.f32 %v374, %v610
        %v627 = vmul.f32 %v377, %v611
        %v628 = vmul.f32 %v380, %v612
        %v629 = vmul.f32 %v383, %v613
        %v630 = vmul.f32 %v386, %v614
        %v631 = vmul.f32 %v389, %v615
        %v632 = vmul.f32 %v392, %v616
        %v633 = vmul.f32 %v395, %v617
        %v634 = vmul.f32 %v398, %v618
        %v635 = vmul.f32 %v401, %v619
        %v636 = vmul.f32 %v404, %v620
        %v637 = vmul.f32 %v407, %v621
        %v638 = vmul.f32 %v410, %v622
        %v639 = vmul.f32 %v413, %v623
        %v640 = vmul.f32 %v416, %v624
        %v641 = vld [vmem:[%s233] sm:$0xff]
        %v642 = vld [vmem:[%s233 + $0x8] sm:$0xff]
        %v643 = vld [vmem:[%s233 + $0x10] sm:$0xff]
        %v644 = vld [vmem:[%s233 + $0x18] sm:$0xff]
        %v645 = vld [vmem:[%s233 + $0x20] sm:$0xff]
        %v646 = vld [vmem:[%s233 + $0x28] sm:$0xff]
        %v647 = vld [vmem:[%s233 + $0x30] sm:$0xff]
        %v648 = vld [vmem:[%s233 + $0x38] sm:$0xff]
        %v649 = vld [vmem:[%s233 + $0x40] sm:$0xff]
        %v650 = vld [vmem:[%s233 + $0x48] sm:$0xff]
        %v651 = vld [vmem:[%s233 + $0x50] sm:$0xff]
        %v652 = vld [vmem:[%s233 + $0x58] sm:$0xff]
        %v653 = vld [vmem:[%s233 + $0x60] sm:$0xff]
        %v654 = vld [vmem:[%s233 + $0x68] sm:$0xff]
        %v655 = vld [vmem:[%s233 + $0x70] sm:$0xff]
        %v656 = vld [vmem:[%s233 + $0x78] sm:$0xff]
        %673 = vrot.lane.b32.xlu0 %v641, 1
        %v674 = vpop.permute.xlu0 %673
        %675 = vrot.lane.b32.xlu0 %v642, 1
        %v676 = vpop.permute.xlu0 %675
        %677 = vrot.lane.b32.xlu0 %v643, 1
        %v678 = vpop.permute.xlu0 %677
        %679 = vrot.lane.b32.xlu0 %v644, 1
        %v680 = vpop.permute.xlu0 %679
        %681 = vrot.lane.b32.xlu0 %v645, 1
        %v682 = vpop.permute.xlu0 %681
        %683 = vrot.lane.b32.xlu0 %v646, 1
        %v684 = vpop.permute.xlu0 %683
        %685 = vrot.lane.b32.xlu0 %v647, 1
        %v686 = vpop.permute.xlu0 %685
        %687 = vrot.lane.b32.xlu0 %v648, 1
        %v688 = vpop.permute.xlu0 %687
        %689 = vrot.lane.b32.xlu0 %v649, 1
        %v690 = vpop.permute.xlu0 %689
        %691 = vrot.lane.b32.xlu0 %v650, 1
        %v692 = vpop.permute.xlu0 %691
        %693 = vrot.lane.b32.xlu0 %v651, 1
        %v694 = vpop.permute.xlu0 %693
        %695 = vrot.lane.b32.xlu0 %v652, 1
        %v696 = vpop.permute.xlu0 %695
        %697 = vrot.lane.b32.xlu0 %v653, 1
        %v698 = vpop.permute.xlu0 %697
        %699 = vrot.lane.b32.xlu0 %v654, 1
        %v700 = vpop.permute.xlu0 %699
        %701 = vrot.lane.b32.xlu0 %v655, 1
        %v702 = vpop.permute.xlu0 %701
        %703 = vrot.lane.b32.xlu0 %v656, 1
        %v704 = vpop.permute.xlu0 %703
        %v721 = vsub.f32 %v641, %v674
        %v722 = vsub.f32 %v642, %v676
        %v723 = vsub.f32 %v643, %v678
        %v724 = vsub.f32 %v644, %v680
        %v725 = vsub.f32 %v645, %v682
        %v726 = vsub.f32 %v646, %v684
        %v727 = vsub.f32 %v647, %v686
        %v728 = vsub.f32 %v648, %v688
        %v729 = vsub.f32 %v649, %v690
        %v730 = vsub.f32 %v650, %v692
        %v731 = vsub.f32 %v651, %v694
        %v732 = vsub.f32 %v652, %v696
        %v733 = vsub.f32 %v653, %v698
        %v734 = vsub.f32 %v654, %v700
        %v735 = vsub.f32 %v655, %v702
        %v736 = vsub.f32 %v656, %v704
        %v737 = vrcp.pop %v641
        %v738 = vmul.f32 %v721, %v737
        %v739 = vrcp.pop %v642
        %v740 = vmul.f32 %v722, %v739
        %v741 = vrcp.pop %v643
        %v742 = vmul.f32 %v723, %v741
        %v743 = vrcp.pop %v644
        %v744 = vmul.f32 %v724, %v743
        %v745 = vrcp.pop %v645
        %v746 = vmul.f32 %v725, %v745
        %v747 = vrcp.pop %v646
        %v748 = vmul.f32 %v726, %v747
        %v749 = vrcp.pop %v647
        %v750 = vmul.f32 %v727, %v749
        %v751 = vrcp.pop %v648
        %v752 = vmul.f32 %v728, %v751
        %v753 = vrcp.pop %v649
        %v754 = vmul.f32 %v729, %v753
        %v755 = vrcp.pop %v650
        %v756 = vmul.f32 %v730, %v755
        %v757 = vrcp.pop %v651
        %v758 = vmul.f32 %v731, %v757
        %v759 = vrcp.pop %v652
        %v760 = vmul.f32 %v732, %v759
        %v761 = vrcp.pop %v653
        %v762 = vmul.f32 %v733, %v761
        %v763 = vrcp.pop %v654
        %v764 = vmul.f32 %v734, %v763
        %v765 = vrcp.pop %v655
        %v766 = vmul.f32 %v735, %v765
        %v767 = vrcp.pop %v656
        %v768 = vmul.f32 %v736, %v767
        %v769 = vmul.f32 %v625, 0.9
        %v770 = vmul.f32 %v626, 0.9
        %v771 = vmul.f32 %v627, 0.9
        %v772 = vmul.f32 %v628, 0.9
        %v773 = vmul.f32 %v629, 0.9
        %v774 = vmul.f32 %v630, 0.9
        %v775 = vmul.f32 %v631, 0.9
        %v776 = vmul.f32 %v632, 0.9
        %v777 = vmul.f32 %v633, 0.9
        %v778 = vmul.f32 %v634, 0.9
        %v779 = vmul.f32 %v635, 0.9
        %v780 = vmul.f32 %v636, 0.9
        %v781 = vmul.f32 %v637, 0.9
        %v782 = vmul.f32 %v638, 0.9
        %v783 = vmul.f32 %v639, 0.9
        %v784 = vmul.f32 %v640, 0.9
        %v785 = vmul.f32 %v738, 0.1
        %v786 = vmul.f32 %v740, 0.1
        %v787 = vmul.f32 %v742, 0.1
        %v788 = vmul.f32 %v744, 0.1
        %v789 = vmul.f32 %v746, 0.1
        %v790 = vmul.f32 %v748, 0.1
        %v791 = vmul.f32 %v750, 0.1
        %v792 = vmul.f32 %v752, 0.1
        %v793 = vmul.f32 %v754, 0.1
        %v794 = vmul.f32 %v756, 0.1
        %v795 = vmul.f32 %v758, 0.1
        %v796 = vmul.f32 %v760, 0.1
        %v797 = vmul.f32 %v762, 0.1
        %v798 = vmul.f32 %v764, 0.1
        %v799 = vmul.f32 %v766, 0.1
        %v800 = vmul.f32 %v768, 0.1
        %v801 = vadd.f32 %v769, %v785
        %v802 = vadd.f32 %v770, %v786
        %v803 = vadd.f32 %v771, %v787
        %v804 = vadd.f32 %v772, %v788
        %v805 = vadd.f32 %v773, %v789
        %v806 = vadd.f32 %v774, %v790
        %v807 = vadd.f32 %v775, %v791
        %v808 = vadd.f32 %v776, %v792
        %v809 = vadd.f32 %v777, %v793
        %v810 = vadd.f32 %v778, %v794
        %v811 = vadd.f32 %v779, %v795
        %v812 = vadd.f32 %v780, %v796
        %v813 = vadd.f32 %v781, %v797
        %v814 = vadd.f32 %v782, %v798
        %v815 = vadd.f32 %v783, %v799
        %v816 = vadd.f32 %v784, %v800
        %833 = vrot.lane.b32.xlu0 %v801, 127
        %v834 = vpop.permute.xlu0 %833
        %835 = vrot.lane.b32.xlu0 %v802, 127
        %v836 = vpop.permute.xlu0 %835
        %837 = vrot.lane.b32.xlu0 %v803, 127
        %v838 = vpop.permute.xlu0 %837
        %839 = vrot.lane.b32.xlu0 %v804, 127
        %v840 = vpop.permute.xlu0 %839
        %841 = vrot.lane.b32.xlu0 %v805, 127
        %v842 = vpop.permute.xlu0 %841
        %843 = vrot.lane.b32.xlu0 %v806, 127
        %v844 = vpop.permute.xlu0 %843
        %845 = vrot.lane.b32.xlu0 %v807, 127
        %v846 = vpop.permute.xlu0 %845
        %847 = vrot.lane.b32.xlu0 %v808, 127
        %v848 = vpop.permute.xlu0 %847
        %849 = vrot.lane.b32.xlu0 %v809, 127
        %v850 = vpop.permute.xlu0 %849
        %851 = vrot.lane.b32.xlu0 %v810, 127
        %v852 = vpop.permute.xlu0 %851
        %853 = vrot.lane.b32.xlu0 %v811, 127
        %v854 = vpop.permute.xlu0 %853
        %855 = vrot.lane.b32.xlu0 %v812, 127
        %v856 = vpop.permute.xlu0 %855
        %857 = vrot.lane.b32.xlu0 %v813, 127
        %v858 = vpop.permute.xlu0 %857
        %859 = vrot.lane.b32.xlu0 %v814, 127
        %v860 = vpop.permute.xlu0 %859
        %861 = vrot.lane.b32.xlu0 %v815, 127
        %v862 = vpop.permute.xlu0 %861
        %863 = vrot.lane.b32.xlu0 %v816, 127
        %v864 = vpop.permute.xlu0 %863
        %vm881 = vcmask 7168
        %882 = vst.msk [vmem:[%s239] sm:$0xff] %vm881, %v834
        %883 = vst.msk [vmem:[%s239 + $0x8] sm:$0xff] %vm881, %v836
        %884 = vst.msk [vmem:[%s239 + $0x10] sm:$0xff] %vm881, %v838
        %885 = vst.msk [vmem:[%s239 + $0x18] sm:$0xff] %vm881, %v840
        %886 = vst.msk [vmem:[%s239 + $0x20] sm:$0xff] %vm881, %v842
        %887 = vst.msk [vmem:[%s239 + $0x28] sm:$0xff] %vm881, %v844
        %888 = vst.msk [vmem:[%s239 + $0x30] sm:$0xff] %vm881, %v846
        %889 = vst.msk [vmem:[%s239 + $0x38] sm:$0xff] %vm881, %v848
        %890 = vst.msk [vmem:[%s239 + $0x40] sm:$0xff] %vm881, %v850
        %891 = vst.msk [vmem:[%s239 + $0x48] sm:$0xff] %vm881, %v852
        %892 = vst.msk [vmem:[%s239 + $0x50] sm:$0xff] %vm881, %v854
        %893 = vst.msk [vmem:[%s239 + $0x58] sm:$0xff] %vm881, %v856
        %894 = vst.msk [vmem:[%s239 + $0x60] sm:$0xff] %vm881, %v858
        %895 = vst.msk [vmem:[%s239 + $0x68] sm:$0xff] %vm881, %v860
        %896 = vst.msk [vmem:[%s239 + $0x70] sm:$0xff] %vm881, %v862
        %897 = vst.msk [vmem:[%s239 + $0x78] sm:$0xff] %vm881, %v864
        %s898 = smul.u32 16, %s17
        %p899 = scmp.lt.s32.totalorder %s898, 31
        %s900 = scalar_select %p899, %s898, 31
        %s901 = smul.addr %s900, 8
        %s902 = scalar_lea.vmem %s3, %s901
        // Predicated region
        $region37: #{tpu_custom_call.1} parent=31 // pred_check
          %p903 = pneg %p113
        $region38: #{tpu_custom_call.1} parent=31 // pred_check_branch
          %905 = sbr.rel (%p903) target = $region40
        $region39: #{tpu_custom_call.1} parent=31 // pred_region
          %s906 = smul.u32 16, %s17
        $region40: #{tpu_custom_call.1} parent=31 // pred_fallthru
          _
      $region32: #{tpu_custom_call.1} parent=5 // pred_fallthru
        _
      %p907 = scmp.le.s32.totalorder 2, %s12
      // Predicated region
      $region41: #{tpu_custom_call.1} parent=5 // pred_check
        %p908 = pneg %p907
      $region42: #{tpu_custom_call.1} parent=5 // pred_check_branch
        %910 = sbr.rel (%p908) target = $region44
      $region43: #{tpu_custom_call.1} parent=5 // pred_region
        %s911 = ssub.s32 %s12, 2
        // Predicated region
        $region45: #{tpu_custom_call.1} parent=43 // pred_check
          %p912 = pneg %p119
        $region46: #{tpu_custom_call.1} parent=43 // pred_check_branch
          %914 = sbr.rel (%p912) target = $region48
        $region47: #{tpu_custom_call.1} parent=43 // pred_region
          %s915 = smul.u32 16, %s18
          %p916 = scmp.lt.s32.totalorder %s915, 31
          %s917 = scalar_select %p916, %s915, 31
          %s918 = smul.addr %s917, 8
          %s919 = scalar_lea.vmem %s3, %s918
        $region48: #{tpu_custom_call.1} parent=43 // pred_fallthru
          _
      $region44: #{tpu_custom_call.1} parent=5 // pred_fallthru
        _
    $region6: #{tpu_custom_call.1} parent=1 // loop_footer
      %s16 = sadd.s32 1, %s12
    $region7: #{tpu_custom_call.1} parent=1 // loop_footer_branch
      %11 = sbr.rel target = $region3
    $region8: #{tpu_custom_call.1} parent=1 // loop_exit
      _
    %920 = vsyncpa [#allocation3], 1
    %s921 = scalar_lea.sflag [#allocation3], 1
    %922 = vsyncpa %s921, 1

</llo_original>
